<compile_context>
chip_gen: v7x
topology: tpu7x:2x2x1
jax: 0.10.0
libtpu: 0.0.40
codegen_flags: <defaults>
</compile_context>

<pallas_src>
import jax
import jax.numpy as jnp
from jax.experimental import pallas as pl
from jax.experimental.pallas import tpu as pltpu


def _round_up(x, m):
    return ((x + m - 1) // m) * m


def _vmem_budget_bytes():
    """Returns (tile-sizing budget, vmem_limit cap), generation-aware."""
    phys = 64 << 20  # conservative default == v7x-class physical VMEM per TC
    try:
        info = pltpu.get_tpu_info()
        phys = int(getattr(info, "vmem_capacity_bytes", phys))
    except Exception:
        pass
    if phys <= (64 << 20):          # v7x: 64 MiB physical -> leave real headroom
        return 32 << 20, 44 << 20
    return 72 << 20, 96 << 20       # v5e / v6e: 128 MiB physical


def _mae_loss_kernel(pred_ref, picked_ref, out_ref, acc_ref):
    """Per grid step: acc[row] += 1 - softmax(pred)[row, label(row)].

    pred_ref   : (TN, C)  logits tile (cast to f32 in-kernel)
    picked_ref : (TN, 1)  f32 logit at the label for each row (pre-gathered)
    out_ref    : (8, 128) lane-dense per-core partial-sum slab
    acc_ref    : (TN, 1)  f32 per-row running accumulator (scratch)
    """
    t = pl.program_id(1)  # reduction axis: batch tiles owned by this core

    @pl.when(t == 0)
    def _():
        acc_ref[...] = jnp.zeros_like(acc_ref)

    p = pred_ref[...].astype(jnp.float32)                     # (TN, C)
    m = jnp.max(p, axis=1, keepdims=True)                     # (TN, 1)  XLU
    denom = jnp.sum(jnp.exp(p - m), axis=1, keepdims=True)    # (TN, 1)  EUP+XLU
    num = jnp.exp(picked_ref[...] - m)                        # (TN, 1)  EUP
    # softmax prob at the label without materializing softmax; EUP reciprocal.
    acc_ref[...] += 1.0 - num * pl.reciprocal(denom, approx=True)

    @pl.when(t == pl.num_programs(1) - 1)
    def _():
        out_ref[...] = jnp.broadcast_to(jnp.sum(acc_ref[...]), out_ref.shape)


def mae_loss(pred, target, num_classes, scale=2.0, *, batch_tile=None):
    """pred: (N, C) float, target: (N,) int. Returns scale * sum_i(1 - softmax(pred)[i, y_i])."""
    N, C = pred.shape
    assert C == num_classes
    itemsize = jnp.dtype(pred.dtype).itemsize
    # sublane packing alignment of the batch tile per dtype
    row_align = {4: 8, 2: 16, 1: 32}.get(itemsize, 8)
    lane_c = _round_up(C, 128)

    vmem_budget, vmem_cap = _vmem_budget_bytes()

    # Accurate per-row VMEM footprint of one grid step: double-buffered pred
    # (lane-padded), double-buffered picked-logit (padded to 128 lanes), the
    # per-row accumulator, and ~3 live f32 (TN, lane_c) temporaries.
    per_row_vmem = (2 * lane_c * itemsize
                    + 2 * 128 * 4
                    + 128 * 4
                    + 3 * lane_c * 4)
    per_row_hbm = C * itemsize + 4

    if batch_tile is None:
        # Target >= ~2 MiB of real HBM data per grid step (amortizes the
        # ~0.35 us per-step overhead); never exceed the VMEM budget.
        desired = max(_round_up((2 << 20) // per_row_hbm, row_align), 1024)
        vmem_rows = max(row_align,
                        (vmem_budget // per_row_vmem) // row_align * row_align)
        tile_cap = max(row_align, min(desired, vmem_rows, 32768))
        n_tiles = max(1, -(-N // tile_cap))
        if n_tiles >= 2 and n_tiles % 2 == 1:
            n_tiles += 1            # even tile count -> both TCs stay busy
        batch_tile = _round_up(-(-N // n_tiles), row_align)
    else:
        assert batch_tile % row_align == 0, (
            f"batch_tile must be a multiple of {row_align} for dtype {pred.dtype}")
        n_tiles = max(1, -(-N // batch_tile))
        if n_tiles >= 2 and n_tiles % 2 == 1:
            n_tiles += 1            # pad a whole masked tile for the 2-way split

    N_pad = batch_tile * n_tiles
    pad = N_pad - N

    n_par = 2 if (n_tiles >= 2 and n_tiles % 2 == 0) else 1
    tiles_per_core = n_tiles // n_par

    # Wrapper-side label-logit gather (replaces in-kernel one-hot path).
    picked = jnp.take_along_axis(
        pred, target.reshape(N, 1).astype(jnp.int32), axis=1).astype(jnp.float32)

    if pad:
        # Padded rows: pred = 0, picked logit = -1e30 -> softmax pick is exactly
        # 0, so each padded row contributes exactly 1.0 (subtracted back below).
        pred = jnp.pad(pred, ((0, pad), (0, 0)))
        picked = jnp.pad(picked, ((0, pad), (0, 0)), constant_values=-1e30)

    # VMEM limit derived from the real per-tile footprint, generation-clamped.
    vmem_need = (2 * batch_tile * lane_c * itemsize   # pred double buffer
                 + 2 * batch_tile * 128 * 4           # picked double buffer
                 + batch_tile * 128 * 4               # accumulator scratch
                 + 2 * 8 * 128 * 4                    # output slab double buffer
                 + 3 * batch_tile * lane_c * 4)       # live f32 temporaries
    vmem_limit = int(min(max(int(1.3 * vmem_need) + (2 << 20), 16 << 20), vmem_cap))

    out = pl.pallas_call(
        _mae_loss_kernel,
        out_shape=jax.ShapeDtypeStruct((n_par, 8, 128), jnp.float32),
        grid_spec=pltpu.PrefetchScalarGridSpec(
            num_scalar_prefetch=0,
            grid=(n_par, tiles_per_core),
            in_specs=[
                pl.BlockSpec((batch_tile, C),
                             lambda c, t: (c * tiles_per_core + t, 0)),
                pl.BlockSpec((batch_tile, 1),
                             lambda c, t: (c * tiles_per_core + t, 0)),
            ],
            out_specs=pl.BlockSpec((None, 8, 128), lambda c, t: (c, 0, 0)),
            scratch_shapes=[pltpu.VMEM((batch_tile, 1), jnp.float32)],
        ),
        compiler_params=pltpu.CompilerParams(
            dimension_semantics=("parallel", "arbitrary"),
            vmem_limit_bytes=vmem_limit,
        ),
    )(pred, picked)

    # Each core wrote its partial sum of (1 - p_label) broadcast over its slab;
    # every padded row contributed exactly 1.0.
    total = jnp.sum(out[:, 0, 0]) - jnp.float32(pad)
    return jnp.float32(scale) * total


def _reference(pred, target, num_classes, scale=2.0):
    sm = jax.nn.softmax(pred.astype(jnp.float32), axis=1)
    one_hot = jax.nn.one_hot(target, num_classes, dtype=jnp.float32)
    loss = 1.0 - jnp.sum(one_hot * sm, axis=1)
    return scale * jnp.sum(loss)


if __name__ == "__main__":
    key = jax.random.PRNGKey(0)
    k1, k2, k3, k4, k5, k6 = jax.random.split(key, 6)
    scale = 2.0

    # Small case matching the module spec (single tile, single core).
    N, C = 8, 32
    pred = jax.random.normal(k1, (N, C), dtype=jnp.float32)
    target = jax.random.randint(k2, (N,), 0, C, dtype=jnp.int32)
    out = jax.block_until_ready(mae_loss(pred, target, num_classes=C, scale=scale))
    ref = _reference(pred, target, C, scale)
    assert jnp.allclose(out, ref, rtol=1e-3, atol=1e-3), (out, ref)

    # Multi-tile case exercising the tiled reduction + 2-way megacore split.
    N2, C2, tile2 = 256, 32, 64
    pred2 = jax.random.normal(k3, (N2, C2), dtype=jnp.float32)
    target2 = jax.random.randint(k4, (N2,), 0, C2, dtype=jnp.int32)
    out2 = jax.block_until_ready(
        mae_loss(pred2, target2, num_classes=C2, scale=scale, batch_tile=tile2))
    ref2 = _reference(pred2, target2, C2, scale)
    assert jnp.allclose(out2, ref2, rtol=1e-3, atol=1e-3), (out2, ref2)

    # Batch not a multiple of the tile: exercises the padded-row correction.
    N3, C3 = 100, 32
    pred3 = jax.random.normal(k5, (N3, C3), dtype=jnp.float32)
    target3 = jax.random.randint(k6, (N3,), 0, C3, dtype=jnp.int32)
    out3 = jax.block_until_ready(mae_loss(pred3, target3, num_classes=C3, scale=scale))
    ref3 = _reference(pred3, target3, C3, scale)
    assert jnp.allclose(out3, ref3, rtol=1e-3, atol=1e-3), (out3, ref3)

    print("KERNEL_OK")
</pallas_src>

<mosaic_0001>
module attributes {stable_mosaic.version = 11 : i64} {
  func.func @_mae_loss_kernel(%arg0: i32, %arg1: i32, %arg2: memref<8x32xf32, #tpu.memory_space<vmem>>, %arg3: memref<8x1xf32, #tpu.memory_space<vmem>>, %arg4: memref<1x8x128xf32, #tpu.memory_space<vmem>>, %arg5: memref<8x1xf32, #tpu.memory_space<vmem>>) attributes {dimension_semantics = [#tpu.dimension_semantics<parallel>, #tpu.dimension_semantics<arbitrary>], iteration_bounds = array<i64: 1, 1>, scalar_prefetch = 0 : i64, scratch_operands = 1 : i64, tpu.core_type = #tpu.core_type<tc>, window_params = [{transform_indices = @transform_0, window_bounds = array<i64: 8, 32>}, {transform_indices = @transform_1, window_bounds = array<i64: 8, 1>}, {transform_indices = @transform_2, window_bounds = array<i64: 1, 8, 128>}]} {
    %c0_i32 = arith.constant 0 : i32
    %0 = arith.cmpi eq, %arg1, %c0_i32 : i32
    %1 = arith.extui %0 : i1 to i32
    %c0_i32_0 = arith.constant 0 : i32
    %2 = arith.cmpi ne, %1, %c0_i32_0 : i32
    scf.if %2 {
      %cst_12 = arith.constant 0.000000e+00 : f32
      %24 = vector.broadcast %cst_12 : f32 to vector<8x1xf32>
      %c0_13 = arith.constant 0 : index
      %c0_14 = arith.constant 0 : index
      %25 = vector.load %arg5[%c0_13, %c0_14] : memref<8x1xf32, #tpu.memory_space<vmem>>, vector<8x1xf32>
      tpu.vector_store %arg5[%c0_13, %c0_14], %24 {strides = array<i32>} : memref<8x1xf32, #tpu.memory_space<vmem>>, vector<8x1xf32>,
    } else {
    }
    %c0 = arith.constant 0 : index
    %c0_1 = arith.constant 0 : index
    %3 = vector.load %arg2[%c0, %c0_1] : memref<8x32xf32, #tpu.memory_space<vmem>>, vector<8x32xf32>
    %cst = arith.constant dense<0xFF800000> : vector<8xf32>
    %4 = vector.multi_reduction <maximumf>, %3, %cst [1] : vector<8x32xf32> to vector<8xf32>
    %5 = vector.shape_cast %4 : vector<8xf32> to vector<8x1xf32>
    %6 = vector.broadcast %5 : vector<8x1xf32> to vector<8x32xf32>
    %7 = arith.subf %3, %6 : vector<8x32xf32>
    %8 = math.exp %7 : vector<8x32xf32>
    %cst_2 = arith.constant dense<0.000000e+00> : vector<8xf32>
    %9 = vector.multi_reduction <add>, %8, %cst_2 [1] : vector<8x32xf32> to vector<8xf32>
    %10 = vector.shape_cast %9 : vector<8xf32> to vector<8x1xf32>
    %c0_3 = arith.constant 0 : index
    %c0_4 = arith.constant 0 : index
    %11 = vector.load %arg3[%c0_3, %c0_4] : memref<8x1xf32, #tpu.memory_space<vmem>>, vector<8x1xf32>
    %12 = arith.subf %11, %5 : vector<8x1xf32>
    %13 = math.exp %12 : vector<8x1xf32>
    %c0_5 = arith.constant 0 : index
    %c0_6 = arith.constant 0 : index
    %14 = vector.load %arg5[%c0_5, %c0_6] : memref<8x1xf32, #tpu.memory_space<vmem>>, vector<8x1xf32>
    %15 = tpu.reciprocal %10 {approx = true} : vector<8x1xf32> -> vector<8x1xf32>
    %16 = arith.mulf %13, %15 : vector<8x1xf32>
    %cst_7 = arith.constant 1.000000e+00 : f32
    %17 = vector.broadcast %cst_7 : f32 to vector<8x1xf32>
    %18 = arith.subf %17, %16 : vector<8x1xf32>
    %19 = arith.addf %14, %18 : vector<8x1xf32>
    %c0_8 = arith.constant 0 : index
    %c0_9 = arith.constant 0 : index
    %20 = vector.load %arg5[%c0_8, %c0_9] : memref<8x1xf32, #tpu.memory_space<vmem>>, vector<8x1xf32>
    tpu.vector_store %arg5[%c0_8, %c0_9], %19 {strides = array<i32>} : memref<8x1xf32, #tpu.memory_space<vmem>>, vector<8x1xf32>,
    %c0_i32_10 = arith.constant 0 : i32
    %21 = arith.cmpi eq, %arg1, %c0_i32_10 : i32
    %22 = arith.extui %21 : i1 to i32
    %c0_i32_11 = arith.constant 0 : i32
    %23 = arith.cmpi ne, %22, %c0_i32_11 : i32
    scf.if %23 {
      %c0_12 = arith.constant 0 : index
      %c0_13 = arith.constant 0 : index
      %24 = vector.load %arg5[%c0_12, %c0_13] : memref<8x1xf32, #tpu.memory_space<vmem>>, vector<8x1xf32>
      %25 = vector.shape_cast %24 : vector<8x1xf32> to vector<1x8x1xf32>
      %cst_14 = arith.constant dense<0.000000e+00> : vector<1xf32>
      %26 = vector.multi_reduction <add>, %25, %cst_14 [1, 2] : vector<1x8x1xf32> to vector<1xf32>
      %27 = vector.shape_cast %26 : vector<1xf32> to vector<1x1x1xf32>
      %28 = vector.extract %27[0, 0, 0] : f32 from vector<1x1x1xf32>
      %29 = vector.broadcast %28 : f32 to vector<8x128xf32>
      %c0_15 = arith.constant 0 : index
      %c0_16 = arith.constant 0 : index
      %c0_17 = arith.constant 0 : index
      %30 = vector.load %arg4[%c0_15, %c0_16, %c0_17] : memref<1x8x128xf32, #tpu.memory_space<vmem>>, vector<1x8x128xf32>
      %31 = vector.shape_cast %30 : vector<1x8x128xf32> to vector<8x128xf32>
      %32 = vector.shape_cast %29 : vector<8x128xf32> to vector<1x8x128xf32>
      tpu.vector_store %arg4[%c0_15, %c0_16, %c0_17], %32 {strides = array<i32>} : memref<1x8x128xf32, #tpu.memory_space<vmem>>, vector<1x8x128xf32>,
    } else {
    }
    return
  }
  func.func @transform_0(%arg0: i32, %arg1: i32) -> (i32, i32) {
    %c1_i32 = arith.constant 1 : i32
    %0 = arith.muli %arg0, %c1_i32 : i32
    %1 = arith.addi %0, %arg1 : i32
    %c0_i32 = arith.constant 0 : i32
    %c0_i32_0 = arith.constant 0 : i32
    return %1, %c0_i32 : i32, i32
  }
  func.func @transform_1(%arg0: i32, %arg1: i32) -> (i32, i32) {
    %c1_i32 = arith.constant 1 : i32
    %0 = arith.muli %arg0, %c1_i32 : i32
    %1 = arith.addi %0, %arg1 : i32
    %c0_i32 = arith.constant 0 : i32
    %c0_i32_0 = arith.constant 0 : i32
    return %1, %c0_i32 : i32, i32
  }
  func.func @transform_2(%arg0: i32, %arg1: i32) -> (i32, i32, i32) {
    %c0_i32 = arith.constant 0 : i32
    %c0_i32_0 = arith.constant 0 : i32
    %c0_i32_1 = arith.constant 0 : i32
    return %arg0, %c0_i32, %c0_i32_0 : i32, i32, i32
  }
}

</mosaic_0001>

<llo_original>
// kernel: tpu_custom_call.1
$region0: #{tpu_custom_call.1}
  #allocation0 [shape = 'u32[]', space=smem, size = 0x4, offset = 0x4, fixed_abs, tag = 'smem constant byte address 0x4 - core index']
  #allocation1 [shape = 'u32[144,128]{1,0:T(1,128)}', space=vmem, size = 0x12000, scoped, tag = 'internal scratch']
  #allocation2 [shape = 'f32[8,1]{1,0:T(8,128)}', space=vmem, size = 0x1000, scoped, tag = 'scratch operand']
  %s0 = inlined_call_operand.vmem [shape: f32[8,32], index: 0, kind: input, shape index: {}]
  %s1 = inlined_call_operand.vmem [shape: f32[8,1], index: 1, kind: input, shape index: {}]
  %s2 = inlined_call_operand.hbm [shape: f32[1,8,128], index: 2, kind: output, shape index: {}]
  %s3 = sld [smem:[#allocation0]]
  $region26: #{tpu_custom_call.1} parent=0
    _
  %s5 = ssub.s32 1, %s3
  %s6 = scalar_select 0, %s5, %s3
  $region1: #{tpu_custom_call.1} parent=0
    #allocation3 [shape = 'u8[4096]{0}', space=vmem, size = 0x1000, scoped, tag = 'output window, operand 0, single buffered']
    #allocation4 [shape = 's32[1]{0}', space=sflag, size = 0x4, scoped, tag = 'scoped memory for tpu_custom_call.1']
    %7 = vsyncpa [#allocation4], 0
    // Predicated region
    $region2: #{tpu_custom_call.1} parent=1 // pred_check
      _
    $region3: #{tpu_custom_call.1} parent=1 // pred_check_branch
      %9 = sbr.rel (0) target = $region5
    $region4: #{tpu_custom_call.1} parent=1 // pred_region
      %s10 = sadd.s32 0, 0
      %p11 = scmp.lt.s32.totalorder %s10, 0
      %s12 = scalar_select %p11, %s10, 0
      %s13 = smul.addr %s12, 8
      %s14 = scalar_lea.vmem %s0, %s13
      %s15 = sadd.s32 0, 0
    $region5: #{tpu_custom_call.1} parent=1 // pred_fallthru
      _
    // Predicated region
    $region6: #{tpu_custom_call.1} parent=1 // pred_check
      _
    $region7: #{tpu_custom_call.1} parent=1 // pred_check_branch
      %17 = sbr.rel (0) target = $region9
    $region8: #{tpu_custom_call.1} parent=1 // pred_region
      %s18 = sadd.s32 0, 0
      %p19 = scmp.lt.s32.totalorder %s18, 0
      %s20 = scalar_select %p19, %s18, 0
      %s21 = smul.addr %s20, 8
      %s22 = scalar_lea.vmem %s1, %s21
      %s23 = sadd.s32 0, 0
    $region9: #{tpu_custom_call.1} parent=1 // pred_fallthru
      _
    %s24 = sadd.s32 0, 0
    %p25 = scmp.lt.s32.totalorder %s24, 0
    %s26 = scalar_select %p25, %s24, 0
    %s27 = smul.addr %s26, 8
    %s28 = scalar_lea.vmem %s0, %s27
    %s29 = sadd.s32 0, 0
    %p30 = scmp.lt.s32.totalorder %s29, 0
    %s31 = scalar_select %p30, %s29, 0
    %s32 = smul.addr %s31, 8
    %s33 = scalar_lea.vmem %s1, %s32
    %s34 = sadd.s32 0, 0
    %p35 = scmp.lt.s32.totalorder %s34, 0
    %s36 = scalar_select %p35, %s34, 0
    %s37 = smul.addr %s36, 8
    %s38 = scalar_lea.vmem %s0, %s37
    %s39 = sadd.s32 0, 0
    %s40 = sadd.s32 0, 0
    %p41 = scmp.lt.s32.totalorder %s40, 0
    %s42 = scalar_select %p41, %s40, 0
    %s43 = smul.addr %s42, 8
    %s44 = scalar_lea.vmem %s1, %s43
    %s45 = sadd.s32 0, 0
    %p46 = scmp.eq.s32.totalorder 0, 0
    // Predicated region
    $region10: #{tpu_custom_call.1} parent=1 // pred_check
      %p47 = pneg %p46
    $region11: #{tpu_custom_call.1} parent=1 // pred_check_branch
      %49 = sbr.rel (%p47) target = $region13
    $region12: #{tpu_custom_call.1} parent=1 // pred_region
      %vm50 = vcmask 7168
      %51 = vst.msk [vmem:[#allocation2] sm:$0xff] %vm50, 0.0
    $region13: #{tpu_custom_call.1} parent=1 // pred_fallthru
      _
    %v52 = vld [vmem:[%s38] sm:$0xff]
    %vm53 = vcmask 261120
    %v54 = vsel %vm53, %v52, -inf
    %55 = vmax.xlane.f32.xlu0 %v54
    %v56 = vpop.xlane.xlu0 %55
    %v57 = vsub.f32 %v52, %v56
    %v58 = vmul.f32 %v57, 1.442695
    %v59 = vpow.pop %v58
    %v60 = vsel %vm53, %v59, 0.0
    %61 = vadd.xlane.f32.xlu0 %v60
    %v62 = vpop.xlane.xlu0 %61
    %v63 = vld [vmem:[%s44] sm:$0xff]
    %v64 = vsub.f32 %v63, %v56
    %v65 = vmul.f32 %v64, 1.442695
    %v66 = vpow.pop %v65
    %v67 = vld [vmem:[#allocation2] sm:$0xff]
    %v68 = vrcp.pop %v62
    %v69 = vmul.f32 %v66, %v68
    %v70 = vsub.f32 1.0, %v69
    %v71 = vadd.f32 %v67, %v70
    %vm72 = vcmask 7168
    %73 = vst.msk [vmem:[#allocation2] sm:$0xff] %vm72, %v71
    // Predicated region
    $region14: #{tpu_custom_call.1} parent=1 // pred_check
      %p74 = pneg %p46
    $region15: #{tpu_custom_call.1} parent=1 // pred_check_branch
      %76 = sbr.rel (%p74) target = $region17
    $region16: #{tpu_custom_call.1} parent=1 // pred_region
      %v77 = vld [vmem:[#allocation2] sm:$0xff]
      %v78 = vsel %vm72, %v77, 0.0
      %79 = vadd.xlane.f32.xlu0 %v78
      %v80 = vpop.xlane.xlu0 %79
      %v81 = vrot.slane %v80, 4
      %v82 = vadd.f32 %v80, %v81
      %v83 = vrot.slane %v82, 2
      %v84 = vadd.f32 %v82, %v83
      %v85 = vrot.slane %v84, 1
      %v86 = vadd.f32 %v84, %v85
      %s87 = vtos %v86
      %v88 = vstv %s87
      %89 = vst [vmem:[#allocation3] sm:$0xff] %v88
    $region17: #{tpu_custom_call.1} parent=1 // pred_fallthru
      _
    // Predicated region
    $region18: #{tpu_custom_call.1} parent=1 // pred_check
      _
    $region19: #{tpu_custom_call.1} parent=1 // pred_check_branch
      %91 = sbr.rel (0) target = $region21
    $region20: #{tpu_custom_call.1} parent=1 // pred_region
      %s93 = ssub.s32 128, 128
      %94 = vsyncadd [#allocation4], %s93
      %s96 = sshll.u32 [#allocation3], 4
      %s97 = int_to_ptr.vmem [resolvable:$true] %s96
      %99 = dma.vmem_to_hbm [thread:$0]  %s97, 128, %s2, [#allocation4]
    $region21: #{tpu_custom_call.1} parent=1 // pred_fallthru
      _
    // Predicated region
    $region22: #{tpu_custom_call.1} parent=1 // pred_check
      _
    $region23: #{tpu_custom_call.1} parent=1 // pred_check_branch
      %101 = sbr.rel (0) target = $region25
    $region24: #{tpu_custom_call.1} parent=1 // pred_region
      %102 = dma.done [#allocation4], 128
    $region25: #{tpu_custom_call.1} parent=1 // pred_fallthru
      _
    %103 = vsyncpa [#allocation4], 1

</llo_original>
